<compile_context>
chip_gen: v7x
topology: tpu7x:2x2x1
jax: 0.10.0
libtpu: 0.0.40
codegen_flags: <defaults>
</compile_context>

<pallas_src>
import functools

import jax
import jax.numpy as jnp
from jax.experimental import pallas as pl
from jax.experimental.pallas import tpu as pltpu


def _round_up(n: int, m: int) -> int:
    return ((n + m - 1) // m) * m


def dqn_mlp_kernel(x_ref, w1_ref, b1_ref, w2_ref, b2_ref, w3_ref, b3_ref, o_ref):
    # fc1 + relu  (bf16 operands, f32 accumulation, f32 epilogue)
    h1 = jnp.dot(x_ref[...], w1_ref[...], preferred_element_type=jnp.float32)
    h1 = jnp.maximum(h1 + b1_ref[...], 0.0)
    # fc2 + relu
    h2 = jnp.dot(h1.astype(jnp.bfloat16), w2_ref[...],
                 preferred_element_type=jnp.float32)
    h2 = jnp.maximum(h2 + b2_ref[...], 0.0)
    # fc3 (no activation); output lanes are 128-padded -> unmasked vst
    out = jnp.dot(h2.astype(jnp.bfloat16), w3_ref[...],
                  preferred_element_type=jnp.float32)
    o_ref[...] = (out + b3_ref[...]).astype(o_ref.dtype)


def dqn_forward(x, params):
    """x: [B, input_dim] float32; params: dict of w1,b1,w2,b2,w3,b3 (f32)."""
    w1, b1 = params["w1"], params["b1"]
    w2, b2 = params["w2"], params["b2"]
    w3, b3 = params["w3"], params["b3"]

    B, input_dim = x.shape
    h1_dim = w1.shape[1]          # 128
    h2_dim = w2.shape[1]          # 64
    out_dim = w3.shape[1]

    # --- padding / tiling choices -------------------------------------------
    K_pad = _round_up(input_dim, 128)       # fc1 contraction dim -> MXU aligned
    N_pad = _round_up(out_dim, 128)         # lane-dense output stores
    TB = 512 if B >= 512 else _round_up(B, 8)   # batch tile (sublane aligned)
    B_pad = _round_up(B, TB)
    num_tiles = B_pad // TB

    # --- operand prep (zero-pad + bf16 cast; all fused by XLA) ---------------
    x_p = jnp.zeros((B_pad, K_pad), jnp.float32)
    x_p = x_p.at[:B, :input_dim].set(x).astype(jnp.bfloat16)

    w1_p = jnp.zeros((K_pad, h1_dim), jnp.float32)
    w1_p = w1_p.at[:input_dim, :].set(w1).astype(jnp.bfloat16)
    w2_p = w2.astype(jnp.bfloat16)
    w3_p = jnp.zeros((h2_dim, N_pad), jnp.float32)
    w3_p = w3_p.at[:, :out_dim].set(w3).astype(jnp.bfloat16)

    b1r = b1.reshape(1, h1_dim)                                  # f32 epilogue
    b2r = b2.reshape(1, h2_dim)
    b3r = jnp.zeros((1, N_pad), jnp.float32).at[0, :out_dim].set(b3)

    # --- specs ----------------------------------------------------------------
    x_spec = pl.BlockSpec((TB, K_pad), lambda i: (i, 0))
    o_spec = pl.BlockSpec((TB, N_pad), lambda i: (i, 0))
    const = lambda shape: pl.BlockSpec(shape, lambda i: (0, 0))  # VMEM-resident

    flops = 2 * B_pad * (K_pad * h1_dim + h1_dim * h2_dim + h2_dim * N_pad)
    bytes_accessed = (x_p.size * 2 + w1_p.size * 2 + w2_p.size * 2
                      + w3_p.size * 2 + (b1r.size + b2r.size + b3r.size) * 4
                      + B_pad * N_pad * 4)

    out_p = pl.pallas_call(
        dqn_mlp_kernel,
        out_shape=jax.ShapeDtypeStruct((B_pad, N_pad), jnp.float32),
        grid=(num_tiles,),
        in_specs=[
            x_spec,
            const(w1_p.shape), const(b1r.shape),
            const(w2_p.shape), const(b2r.shape),
            const(w3_p.shape), const(b3r.shape),
        ],
        out_specs=o_spec,
        compiler_params=pltpu.CompilerParams(
            dimension_semantics=("parallel",),
        ),
        cost_estimate=pl.CostEstimate(
            flops=flops, transcendentals=0, bytes_accessed=bytes_accessed),
    )(x_p, w1_p, b1r, w2_p, b2r, w3_p, b3r)

    return out_p[:B, :out_dim]


def init_params(key, input_dim, output_dim):
    """Deterministic init matching the nn.Linear shapes of DQN.__init__."""
    dims = [(input_dim, 128), (128, 64), (64, output_dim)]
    params = {}
    for i, (fan_in, fan_out) in enumerate(dims, start=1):
        key, kw, kb = jax.random.split(key, 3)
        bound = 1.0 / jnp.sqrt(fan_in)
        # stored as [in, out]  (== PyTorch weight [out, in] transposed)
        params[f"w{i}"] = jax.random.uniform(
            kw, (fan_in, fan_out), jnp.float32, -bound, bound)
        params[f"b{i}"] = jax.random.uniform(
            kb, (fan_out,), jnp.float32, -bound, bound)
    return params


def reference_forward_f32(x, params):
    h1 = jnp.maximum(x @ params["w1"] + params["b1"], 0.0)
    h2 = jnp.maximum(h1 @ params["w2"] + params["b2"], 0.0)
    return h2 @ params["w3"] + params["b3"]


def reference_forward_bf16(x, params):
    """Same bf16-operand / f32-accumulate scheme as the kernel."""
    f32 = functools.partial(jnp.dot, preferred_element_type=jnp.float32)
    bf = lambda a: a.astype(jnp.bfloat16)
    h1 = jnp.maximum(f32(bf(x), bf(params["w1"])) + params["b1"], 0.0)
    h2 = jnp.maximum(f32(bf(h1), bf(params["w2"])) + params["b2"], 0.0)
    return f32(bf(h2), bf(params["w3"])) + params["b3"]


if __name__ == "__main__":
    key = jax.random.PRNGKey(0)
    key, kx = jax.random.split(key)

    batch = 8
    input_dim = 16   # e.g. state/feature dimension
    output_dim = 8   # e.g. number of products (actions)

    x = jax.random.normal(kx, (batch, input_dim), dtype=jnp.float32)
    params = init_params(key, input_dim, output_dim)

    out = dqn_forward(x, params)
    out = jax.block_until_ready(out)
    assert out.shape == (batch, output_dim)

    # Tight check vs a reference using the identical bf16/f32 mixed scheme.
    ref_bf16 = reference_forward_bf16(x, params)
    assert jnp.allclose(out, ref_bf16, atol=2e-3, rtol=2e-3), \
        "mismatch vs bf16-matched reference"

    # Loose check vs the pure-f32 PyTorch-equivalent reference (bf16 mantissa loss).
    ref_f32 = reference_forward_f32(x, params)
    assert jnp.allclose(out, ref_f32, atol=5e-2, rtol=5e-2), \
        "mismatch vs f32 reference"

    print("KERNEL_OK")
</pallas_src>

<mosaic_0001>
module attributes {stable_mosaic.version = 11 : i64} {
  func.func @dqn_mlp_kernel(%arg0: i32, %arg1: memref<8x128xbf16, #tpu.memory_space<vmem>>, %arg2: memref<128x128xbf16, #tpu.memory_space<vmem>>, %arg3: memref<1x128xf32, #tpu.memory_space<vmem>>, %arg4: memref<128x64xbf16, #tpu.memory_space<vmem>>, %arg5: memref<1x64xf32, #tpu.memory_space<vmem>>, %arg6: memref<64x128xbf16, #tpu.memory_space<vmem>>, %arg7: memref<1x128xf32, #tpu.memory_space<vmem>>, %arg8: memref<8x128xf32, #tpu.memory_space<vmem>>) attributes {dimension_semantics = [#tpu.dimension_semantics<parallel>], iteration_bounds = array<i64: 1>, scalar_prefetch = 0 : i64, scratch_operands = 0 : i64, tpu.core_type = #tpu.core_type<tc>, window_params = [{transform_indices = @transform_0, window_bounds = array<i64: 8, 128>}, {pipeline_mode = #tpu.pipeline_mode<synchronous>, transform_indices = @transform_1, window_bounds = array<i64: 128, 128>}, {pipeline_mode = #tpu.pipeline_mode<synchronous>, transform_indices = @transform_2, window_bounds = array<i64: 1, 128>}, {pipeline_mode = #tpu.pipeline_mode<synchronous>, transform_indices = @transform_3, window_bounds = array<i64: 128, 64>}, {pipeline_mode = #tpu.pipeline_mode<synchronous>, transform_indices = @transform_4, window_bounds = array<i64: 1, 64>}, {pipeline_mode = #tpu.pipeline_mode<synchronous>, transform_indices = @transform_5, window_bounds = array<i64: 64, 128>}, {pipeline_mode = #tpu.pipeline_mode<synchronous>, transform_indices = @transform_6, window_bounds = array<i64: 1, 128>}, {transform_indices = @transform_7, window_bounds = array<i64: 8, 128>}]} {
    %c0 = arith.constant 0 : index
    %c0_0 = arith.constant 0 : index
    %0 = vector.load %arg1[%c0, %c0_0] : memref<8x128xbf16, #tpu.memory_space<vmem>>, vector<8x128xbf16>
    %c0_1 = arith.constant 0 : index
    %c0_2 = arith.constant 0 : index
    %1 = vector.load %arg2[%c0_1, %c0_2] : memref<128x128xbf16, #tpu.memory_space<vmem>>, vector<128x128xbf16>
    %cst = arith.constant dense<0.000000e+00> : vector<8x128xf32>
    %2 = tpu.matmul %0, %1, %cst {dimension_numbers = #tpu.dot_dimension_numbers<[1], [0], [0], [1], [0, 0, 1, 1], [], []>} : vector<8x128xbf16>, vector<128x128xbf16>, vector<8x128xf32> -> vector<8x128xf32>
    %c0_3 = arith.constant 0 : index
    %c0_4 = arith.constant 0 : index
    %3 = vector.load %arg3[%c0_3, %c0_4] : memref<1x128xf32, #tpu.memory_space<vmem>>, vector<1x128xf32>
    %4 = vector.broadcast %3 : vector<1x128xf32> to vector<8x128xf32>
    %5 = arith.addf %2, %4 : vector<8x128xf32>
    %cst_5 = arith.constant 0.000000e+00 : f32
    %6 = vector.broadcast %cst_5 : f32 to vector<8x128xf32>
    %7 = arith.maximumf %5, %6 : vector<8x128xf32>
    %8 = arith.truncf %7 : vector<8x128xf32> to vector<8x128xbf16>
    %c0_6 = arith.constant 0 : index
    %c0_7 = arith.constant 0 : index
    %9 = vector.load %arg4[%c0_6, %c0_7] : memref<128x64xbf16, #tpu.memory_space<vmem>>, vector<128x64xbf16>
    %cst_8 = arith.constant dense<0.000000e+00> : vector<8x64xf32>
    %10 = tpu.matmul %8, %9, %cst_8 {dimension_numbers = #tpu.dot_dimension_numbers<[1], [0], [0], [1], [0, 0, 1, 1], [], []>} : vector<8x128xbf16>, vector<128x64xbf16>, vector<8x64xf32> -> vector<8x64xf32>
    %c0_9 = arith.constant 0 : index
    %c0_10 = arith.constant 0 : index
    %11 = vector.load %arg5[%c0_9, %c0_10] : memref<1x64xf32, #tpu.memory_space<vmem>>, vector<1x64xf32>
    %12 = vector.broadcast %11 : vector<1x64xf32> to vector<8x64xf32>
    %13 = arith.addf %10, %12 : vector<8x64xf32>
    %cst_11 = arith.constant 0.000000e+00 : f32
    %14 = vector.broadcast %cst_11 : f32 to vector<8x64xf32>
    %15 = arith.maximumf %13, %14 : vector<8x64xf32>
    %16 = arith.truncf %15 : vector<8x64xf32> to vector<8x64xbf16>
    %c0_12 = arith.constant 0 : index
    %c0_13 = arith.constant 0 : index
    %17 = vector.load %arg6[%c0_12, %c0_13] : memref<64x128xbf16, #tpu.memory_space<vmem>>, vector<64x128xbf16>
    %cst_14 = arith.constant dense<0.000000e+00> : vector<8x128xf32>
    %18 = tpu.matmul %16, %17, %cst_14 {dimension_numbers = #tpu.dot_dimension_numbers<[1], [0], [0], [1], [0, 0, 1, 1], [], []>} : vector<8x64xbf16>, vector<64x128xbf16>, vector<8x128xf32> -> vector<8x128xf32>
    %c0_15 = arith.constant 0 : index
    %c0_16 = arith.constant 0 : index
    %19 = vector.load %arg7[%c0_15, %c0_16] : memref<1x128xf32, #tpu.memory_space<vmem>>, vector<1x128xf32>
    %20 = vector.broadcast %19 : vector<1x128xf32> to vector<8x128xf32>
    %21 = arith.addf %18, %20 : vector<8x128xf32>
    %c0_17 = arith.constant 0 : index
    %c0_18 = arith.constant 0 : index
    %22 = vector.load %arg8[%c0_17, %c0_18] : memref<8x128xf32, #tpu.memory_space<vmem>>, vector<8x128xf32>
    tpu.vector_store %arg8[%c0_17, %c0_18], %21 {strides = array<i32>} : memref<8x128xf32, #tpu.memory_space<vmem>>, vector<8x128xf32>,
    return
  }
  func.func @transform_0(%arg0: i32) -> (i32, i32) {
    %c0_i32 = arith.constant 0 : i32
    %c0_i32_0 = arith.constant 0 : i32
    return %arg0, %c0_i32 : i32, i32
  }
  func.func @transform_1(%arg0: i32) -> (i32, i32) {
    %c0_i32 = arith.constant 0 : i32
    %c0_i32_0 = arith.constant 0 : i32
    %c0_i32_1 = arith.constant 0 : i32
    return %c0_i32, %c0_i32_0 : i32, i32
  }
  func.func @transform_2(%arg0: i32) -> (i32, i32) {
    %c0_i32 = arith.constant 0 : i32
    %c0_i32_0 = arith.constant 0 : i32
    %c0_i32_1 = arith.constant 0 : i32
    return %c0_i32, %c0_i32_0 : i32, i32
  }
  func.func @transform_3(%arg0: i32) -> (i32, i32) {
    %c0_i32 = arith.constant 0 : i32
    %c0_i32_0 = arith.constant 0 : i32
    %c0_i32_1 = arith.constant 0 : i32
    return %c0_i32, %c0_i32_0 : i32, i32
  }
  func.func @transform_4(%arg0: i32) -> (i32, i32) {
    %c0_i32 = arith.constant 0 : i32
    %c0_i32_0 = arith.constant 0 : i32
    %c0_i32_1 = arith.constant 0 : i32
    return %c0_i32, %c0_i32_0 : i32, i32
  }
  func.func @transform_5(%arg0: i32) -> (i32, i32) {
    %c0_i32 = arith.constant 0 : i32
    %c0_i32_0 = arith.constant 0 : i32
    %c0_i32_1 = arith.constant 0 : i32
    return %c0_i32, %c0_i32_0 : i32, i32
  }
  func.func @transform_6(%arg0: i32) -> (i32, i32) {
    %c0_i32 = arith.constant 0 : i32
    %c0_i32_0 = arith.constant 0 : i32
    %c0_i32_1 = arith.constant 0 : i32
    return %c0_i32, %c0_i32_0 : i32, i32
  }
  func.func @transform_7(%arg0: i32) -> (i32, i32) {
    %c0_i32 = arith.constant 0 : i32
    %c0_i32_0 = arith.constant 0 : i32
    return %arg0, %c0_i32 : i32, i32
  }
}

</mosaic_0001>

<llo_original>
// kernel: tpu_custom_call.1
$region0: #{tpu_custom_call.1}
  #allocation0 [shape = 'u32[]', space=smem, size = 0x4, offset = 0x4, fixed_abs, tag = 'smem constant byte address 0x4 - core index']
  #allocation1 [shape = 'u32[144,128]{1,0:T(1,128)}', space=vmem, size = 0x12000, scoped, tag = 'internal scratch']
  %s0 = inlined_call_operand.hbm [shape: bf16[8,128], index: 0, kind: input, shape index: {}]
  %s1 = inlined_call_operand.vmem [shape: bf16[128,128], index: 1, kind: input, shape index: {}]
  %s2 = inlined_call_operand.vmem [shape: f32[1,128], index: 2, kind: input, shape index: {}]
  %s3 = inlined_call_operand.vmem [shape: bf16[128,64], index: 3, kind: input, shape index: {}]
  %s4 = inlined_call_operand.vmem [shape: f32[1,64], index: 4, kind: input, shape index: {}]
  %s5 = inlined_call_operand.vmem [shape: bf16[64,128], index: 5, kind: input, shape index: {}]
  %s6 = inlined_call_operand.vmem [shape: f32[1,128], index: 6, kind: input, shape index: {}]
  %s7 = inlined_call_operand.hbm [shape: f32[8,128], index: 7, kind: output, shape index: {}]
  %s8 = sld [smem:[#allocation0]]
  $region42: #{tpu_custom_call.1} parent=0
    _
  %s10 = ssub.s32 1, %s8
  %s11 = scalar_select 0, %s10, %s8
  $region1: #{tpu_custom_call.1} parent=0
    #allocation2 [shape = 'u8[2048]{0}', space=vmem, size = 0x800, scoped, tag = 'input window, operand 0, single buffered']
    #allocation3 [shape = 's32[1]{0}', space=sflag, size = 0x4, scoped, tag = 'scoped memory for tpu_custom_call.1']
    #allocation4 [shape = 's32[1]{0}', space=sflag, size = 0x4, scoped, tag = 'scoped memory for tpu_custom_call.1']
    #allocation5 [shape = 'u8[4096]{0}', space=vmem, size = 0x1000, scoped, tag = 'output window, operand 0, single buffered']
    %12 = vsyncpa [#allocation3], 0
    %13 = vsyncpa [#allocation4], 0
    // Predicated region
    $region2: #{tpu_custom_call.1} parent=1 // pred_check
      _
    $region3: #{tpu_custom_call.1} parent=1 // pred_check_branch
      %15 = sbr.rel (0) target = $region5
    $region4: #{tpu_custom_call.1} parent=1 // pred_region
      %s17 = ssub.s32 64, 64
      %18 = vsyncadd [#allocation3], %s17
      %s20 = sshll.u32 [#allocation2], 4
      %s21 = int_to_ptr.vmem [resolvable:$true] %s20
      %23 = dma.hbm_to_vmem [thread:$0]  %s0, 64, %s21, [#allocation3]
    $region5: #{tpu_custom_call.1} parent=1 // pred_fallthru
      _
    // Predicated region
    $region6: #{tpu_custom_call.1} parent=1 // pred_check
      _
    $region7: #{tpu_custom_call.1} parent=1 // pred_check_branch
      %25 = sbr.rel (0) target = $region9
    $region8: #{tpu_custom_call.1} parent=1 // pred_region
      _
    $region9: #{tpu_custom_call.1} parent=1 // pred_fallthru
      _
    // Predicated region
    $region10: #{tpu_custom_call.1} parent=1 // pred_check
      _
    $region11: #{tpu_custom_call.1} parent=1 // pred_check_branch
      %27 = sbr.rel (0) target = $region13
    $region12: #{tpu_custom_call.1} parent=1 // pred_region
      _
    $region13: #{tpu_custom_call.1} parent=1 // pred_fallthru
      _
    // Predicated region
    $region14: #{tpu_custom_call.1} parent=1 // pred_check
      _
    $region15: #{tpu_custom_call.1} parent=1 // pred_check_branch
      %29 = sbr.rel (0) target = $region17
    $region16: #{tpu_custom_call.1} parent=1 // pred_region
      _
    $region17: #{tpu_custom_call.1} parent=1 // pred_fallthru
      _
    // Predicated region
    $region18: #{tpu_custom_call.1} parent=1 // pred_check
      _
    $region19: #{tpu_custom_call.1} parent=1 // pred_check_branch
      %31 = sbr.rel (0) target = $region21
    $region20: #{tpu_custom_call.1} parent=1 // pred_region
      _
    $region21: #{tpu_custom_call.1} parent=1 // pred_fallthru
      _
    // Predicated region
    $region22: #{tpu_custom_call.1} parent=1 // pred_check
      _
    $region23: #{tpu_custom_call.1} parent=1 // pred_check_branch
      %33 = sbr.rel (0) target = $region25
    $region24: #{tpu_custom_call.1} parent=1 // pred_region
      _
    $region25: #{tpu_custom_call.1} parent=1 // pred_fallthru
      _
    // Predicated region
    $region26: #{tpu_custom_call.1} parent=1 // pred_check
      _
    $region27: #{tpu_custom_call.1} parent=1 // pred_check_branch
      %35 = sbr.rel (0) target = $region29
    $region28: #{tpu_custom_call.1} parent=1 // pred_region
      _
    $region29: #{tpu_custom_call.1} parent=1 // pred_fallthru
      _
    // Predicated region
    $region30: #{tpu_custom_call.1} parent=1 // pred_check
      _
    $region31: #{tpu_custom_call.1} parent=1 // pred_check_branch
      %37 = sbr.rel (0) target = $region33
    $region32: #{tpu_custom_call.1} parent=1 // pred_region
      %38 = dma.done [#allocation3], 64
    $region33: #{tpu_custom_call.1} parent=1 // pred_fallthru
      _
    %v40 = vld [vmem:[#allocation2] sm:$0xf]
    %v41 = vld [vmem:[%s1] sm:$0xf]
    %v42 = vld [vmem:[%s1 + $0x4] sm:$0xf]
    %v43 = vld [vmem:[%s1 + $0x8] sm:$0xf]
    %v44 = vld [vmem:[%s1 + $0xc] sm:$0xf]
    %v45 = vld [vmem:[%s1 + $0x10] sm:$0xf]
    %v46 = vld [vmem:[%s1 + $0x14] sm:$0xf]
    %v47 = vld [vmem:[%s1 + $0x18] sm:$0xf]
    %v48 = vld [vmem:[%s1 + $0x1c] sm:$0xf]
    %v49 = vld [vmem:[%s1 + $0x20] sm:$0xf]
    %v50 = vld [vmem:[%s1 + $0x24] sm:$0xf]
    %v51 = vld [vmem:[%s1 + $0x28] sm:$0xf]
    %v52 = vld [vmem:[%s1 + $0x2c] sm:$0xf]
    %v53 = vld [vmem:[%s1 + $0x30] sm:$0xf]
    %v54 = vld [vmem:[%s1 + $0x34] sm:$0xf]
    %v55 = vld [vmem:[%s1 + $0x38] sm:$0xf]
    %v56 = vld [vmem:[%s1 + $0x3c] sm:$0xf]
    %v57 = vld [vmem:[%s2] sm:$0x1]
    %v59 = vlaneseq
    %v60 = vshrl.u32 %v59, 7
    %v61 = vsub.s32 0, %v60
    %v62 = vrot.slane %v57, %v61
    %v80 = vunpack.c.l.b16 %v41
    %v81 = vunpack.c.l.b16 %v42
    %v82 = vunpack.c.l.b16 %v43
    %v83 = vunpack.c.l.b16 %v44
    %v84 = vunpack.c.l.b16 %v45
    %v85 = vunpack.c.l.b16 %v46
    %v86 = vunpack.c.l.b16 %v47
    %v87 = vunpack.c.l.b16 %v48
    %v88 = vunpack.c.l.b16 %v49
    %v89 = vunpack.c.l.b16 %v50
    %v90 = vunpack.c.l.b16 %v51
    %v91 = vunpack.c.l.b16 %v52
    %v92 = vunpack.c.l.b16 %v53
    %v93 = vunpack.c.l.b16 %v54
    %v94 = vunpack.c.l.b16 %v55
    %v95 = vunpack.c.l.b16 %v56
    %v96 = vpack.c.b16 %v81, %v80
    %v97 = vpack.c.b16 %v83, %v82
    %v98 = vpack.c.b16 %v85, %v84
    %v99 = vpack.c.b16 %v87, %v86
    %v100 = vpack.c.b16 %v89, %v88
    %v101 = vpack.c.b16 %v91, %v90
    %v102 = vpack.c.b16 %v93, %v92
    %v103 = vpack.c.b16 %v95, %v94
    %112 = vmatprep.subr.bf16.mxu0 0
    %113 = vmatpush1.bf16.msra.mxu0 %v96
    %114 = vmatprep.subr.bf16.mxu0 0
    %115 = vmatpush1.bf16.msra.mxu0 %v97
    %116 = vmatprep.subr.bf16.mxu0 0
    %117 = vmatpush1.bf16.msra.mxu0 %v98
    %118 = vmatprep.subr.bf16.mxu0 0
    %119 = vmatpush1.bf16.msra.mxu0 %v99
    %120 = vmatprep.subr.bf16.mxu0 0
    %121 = vmatpush1.bf16.msra.mxu0 %v100
    %122 = vmatprep.subr.bf16.mxu0 0
    %123 = vmatpush1.bf16.msra.mxu0 %v101
    %124 = vmatprep.subr.bf16.mxu0 0
    %125 = vmatpush1.bf16.msra.mxu0 %v102
    %126 = vmatprep.subr.bf16.mxu0 0
    %127 = vmatpush1.bf16.msra.mxu0 %v103
    %128 = vmatprep.subr.bf16.mxu0 0
    %129 = vmatpush1.bf16.msra.mxu0 0
    %130 = vmatprep.subr.bf16.mxu0 0
    %131 = vmatpush1.bf16.msra.mxu0 0
    %132 = vmatprep.subr.bf16.mxu0 0
    %133 = vmatpush1.bf16.msra.mxu0 0
    %134 = vmatprep.subr.bf16.mxu0 0
    %135 = vmatpush1.bf16.msra.mxu0 0
    %136 = vmatprep.subr.bf16.mxu0 0
    %137 = vmatpush1.bf16.msra.mxu0 0
    %138 = vmatprep.subr.bf16.mxu0 0
    %139 = vmatpush1.bf16.msra.mxu0 0
    %140 = vmatprep.subr.bf16.mxu0 0
    %141 = vmatpush1.bf16.msra.mxu0 0
    %142 = vmatprep.subr.bf16.mxu0 0
    %143 = vmatpush1.bf16.msra.mxu0 0
    %144 = vmatprep.mubr.bf16.mxu0 0
    %145 = vmatmul.mubr.bf16.gmra.mrb[0].mxu0 %v40
    %v146 = vpop.f32.mrb[0].mxu0
    %v147 = vadd.f32 %v62, %v146
    %v148 = vpop.f32.mrb[0].mxu0
    %v149 = vpop.f32.mrb[0].mxu0
    %v150 = vpop.f32.mrb[0].mxu0
    %151 = vdwg.mxu0
    %v152 = vmax.f32 %v147, 0.0
    %v153 = vpack.c.bf16 %v152, %v152
    %v154 = vld [vmem:[%s3] sm:$0xf]
    %v155 = vld [vmem:[%s3 + $0x4] sm:$0xf]
    %v156 = vld [vmem:[%s3 + $0x8] sm:$0xf]
    %v157 = vld [vmem:[%s3 + $0xc] sm:$0xf]
    %v158 = vld [vmem:[%s3 + $0x10] sm:$0xf]
    %v159 = vld [vmem:[%s3 + $0x14] sm:$0xf]
    %v160 = vld [vmem:[%s3 + $0x18] sm:$0xf]
    %v161 = vld [vmem:[%s3 + $0x1c] sm:$0xf]
    %v162 = vld [vmem:[%s3 + $0x20] sm:$0xf]
    %v163 = vld [vmem:[%s3 + $0x24] sm:$0xf]
    %v164 = vld [vmem:[%s3 + $0x28] sm:$0xf]
    %v165 = vld [vmem:[%s3 + $0x2c] sm:$0xf]
    %v166 = vld [vmem:[%s3 + $0x30] sm:$0xf]
    %v167 = vld [vmem:[%s3 + $0x34] sm:$0xf]
    %v168 = vld [vmem:[%s3 + $0x38] sm:$0xf]
    %v169 = vld [vmem:[%s3 + $0x3c] sm:$0xf]
    %v170 = vld [vmem:[%s4] sm:$0x1]
    %v172 = vlaneseq
    %v173 = vshrl.u32 %v172, 7
    %v174 = vsub.s32 0, %v173
    %v175 = vrot.slane %v170, %v174
    %v193 = vunpack.c.l.b16 %v154
    %v194 = vunpack.c.l.b16 %v155
    %v195 = vunpack.c.l.b16 %v156
    %v196 = vunpack.c.l.b16 %v157
    %v197 = vunpack.c.l.b16 %v158
    %v198 = vunpack.c.l.b16 %v159
    %v199 = vunpack.c.l.b16 %v160
    %v200 = vunpack.c.l.b16 %v161
    %v201 = vunpack.c.l.b16 %v162
    %v202 = vunpack.c.l.b16 %v163
    %v203 = vunpack.c.l.b16 %v164
    %v204 = vunpack.c.l.b16 %v165
    %v205 = vunpack.c.l.b16 %v166
    %v206 = vunpack.c.l.b16 %v167
    %v207 = vunpack.c.l.b16 %v168
    %v208 = vunpack.c.l.b16 %v169
    %v209 = vpack.c.b16 %v194, %v193
    %v210 = vpack.c.b16 %v196, %v195
    %v211 = vpack.c.b16 %v198, %v197
    %v212 = vpack.c.b16 %v200, %v199
    %v213 = vpack.c.b16 %v202, %v201
    %v214 = vpack.c.b16 %v204, %v203
    %v215 = vpack.c.b16 %v206, %v205
    %v216 = vpack.c.b16 %v208, %v207
    %225 = vmatprep.subr.bf16.mxu0 0
    %226 = vmatpush1.bf16.msra.mxu0 %v209
    %227 = vmatprep.subr.bf16.mxu0 0
    %228 = vmatpush1.bf16.msra.mxu0 %v210
    %229 = vmatprep.subr.bf16.mxu0 0
    %230 = vmatpush1.bf16.msra.mxu0 %v211
    %231 = vmatprep.subr.bf16.mxu0 0
    %232 = vmatpush1.bf16.msra.mxu0 %v212
    %233 = vmatprep.subr.bf16.mxu0 0
    %234 = vmatpush1.bf16.msra.mxu0 %v213
    %235 = vmatprep.subr.bf16.mxu0 0
    %236 = vmatpush1.bf16.msra.mxu0 %v214
    %237 = vmatprep.subr.bf16.mxu0 0
    %238 = vmatpush1.bf16.msra.mxu0 %v215
    %239 = vmatprep.subr.bf16.mxu0 0
    %240 = vmatpush1.bf16.msra.mxu0 %v216
    %241 = vmatprep.subr.bf16.mxu0 0
    %242 = vmatpush1.bf16.msra.mxu0 0
    %243 = vmatprep.subr.bf16.mxu0 0
    %244 = vmatpush1.bf16.msra.mxu0 0
    %245 = vmatprep.subr.bf16.mxu0 0
    %246 = vmatpush1.bf16.msra.mxu0 0
    %247 = vmatprep.subr.bf16.mxu0 0
    %248 = vmatpush1.bf16.msra.mxu0 0
    %249 = vmatprep.subr.bf16.mxu0 0
    %250 = vmatpush1.bf16.msra.mxu0 0
    %251 = vmatprep.subr.bf16.mxu0 0
    %252 = vmatpush1.bf16.msra.mxu0 0
    %253 = vmatprep.subr.bf16.mxu0 0
    %254 = vmatpush1.bf16.msra.mxu0 0
    %255 = vmatprep.subr.bf16.mxu0 0
    %256 = vmatpush1.bf16.msra.mxu0 0
    %257 = vmatprep.mubr.bf16.mxu0 0
    %258 = vmatmul.mubr.bf16.gmra.mrb[0].mxu0 %v153
    %v259 = vpop.f32.mrb[0].mxu0
    %v260 = vadd.f32 %v175, %v259
    %v261 = vpop.f32.mrb[0].mxu0
    %v262 = vpop.f32.mrb[0].mxu0
    %v263 = vpop.f32.mrb[0].mxu0
    %264 = vdwg.mxu0
    %v265 = vmax.f32 %v260, 0.0
    %v266 = vpack.c.bf16 %v265, %v265
    %v267 = vld [vmem:[%s5] sm:$0xf]
    %v268 = vld [vmem:[%s5 + $0x4] sm:$0xf]
    %v269 = vld [vmem:[%s5 + $0x8] sm:$0xf]
    %v270 = vld [vmem:[%s5 + $0xc] sm:$0xf]
    %v271 = vld [vmem:[%s5 + $0x10] sm:$0xf]
    %v272 = vld [vmem:[%s5 + $0x14] sm:$0xf]
    %v273 = vld [vmem:[%s5 + $0x18] sm:$0xf]
    %v274 = vld [vmem:[%s5 + $0x1c] sm:$0xf]
    %v275 = vld [vmem:[%s6] sm:$0x1]
    %v277 = vlaneseq
    %v278 = vshrl.u32 %v277, 7
    %v279 = vsub.s32 0, %v278
    %v280 = vrot.slane %v275, %v279
    %v290 = vunpack.c.l.b16 %v267
    %v291 = vunpack.c.l.b16 %v268
    %v292 = vunpack.c.l.b16 %v269
    %v293 = vunpack.c.l.b16 %v270
    %v294 = vunpack.c.l.b16 %v271
    %v295 = vunpack.c.l.b16 %v272
    %v296 = vunpack.c.l.b16 %v273
    %v297 = vunpack.c.l.b16 %v274
    %v298 = vpack.c.b16 %v291, %v290
    %v299 = vpack.c.b16 %v293, %v292
    %v300 = vpack.c.b16 %v295, %v294
    %v301 = vpack.c.b16 %v297, %v296
    %vm306 = vcmask 523264
    %v308 = vsel %vm306, %v266, 0
    %310 = vmatprep.subr.bf16.mxu0 0
    %311 = vmatpush1.bf16.msra.mxu0 %v298
    %312 = vmatprep.subr.bf16.mxu0 0
    %313 = vmatpush1.bf16.msra.mxu0 %v299
    %314 = vmatprep.subr.bf16.mxu0 0
    %315 = vmatpush1.bf16.msra.mxu0 %v300
    %316 = vmatprep.subr.bf16.mxu0 0
    %317 = vmatpush1.bf16.msra.mxu0 %v301
    %318 = vmatprep.subr.bf16.mxu0 0
    %319 = vmatpush1.bf16.msra.mxu0 0
    %320 = vmatprep.subr.bf16.mxu0 0
    %321 = vmatpush1.bf16.msra.mxu0 0
    %322 = vmatprep.subr.bf16.mxu0 0
    %323 = vmatpush1.bf16.msra.mxu0 0
    %324 = vmatprep.subr.bf16.mxu0 0
    %325 = vmatpush1.bf16.msra.mxu0 0
    %326 = vmatprep.subr.bf16.mxu0 0
    %327 = vmatpush1.bf16.msra.mxu0 0
    %328 = vmatprep.subr.bf16.mxu0 0
    %329 = vmatpush1.bf16.msra.mxu0 0
    %330 = vmatprep.subr.bf16.mxu0 0
    %331 = vmatpush1.bf16.msra.mxu0 0
    %332 = vmatprep.subr.bf16.mxu0 0
    %333 = vmatpush1.bf16.msra.mxu0 0
    %334 = vmatprep.subr.bf16.mxu0 0
    %335 = vmatpush1.bf16.msra.mxu0 0
    %336 = vmatprep.subr.bf16.mxu0 0
    %337 = vmatpush1.bf16.msra.mxu0 0
    %338 = vmatprep.subr.bf16.mxu0 0
    %339 = vmatpush1.bf16.msra.mxu0 0
    %340 = vmatprep.subr.bf16.mxu0 0
    %341 = vmatpush1.bf16.msra.mxu0 0
    %342 = vmatprep.mubr.bf16.mxu0 0
    %343 = vmatmul.mubr.bf16.gmra.mrb[0].mxu0 %v308
    %v344 = vpop.f32.mrb[0].mxu0
    %v345 = vadd.f32 %v280, %v344
    %v346 = vpop.f32.mrb[0].mxu0
    %v347 = vpop.f32.mrb[0].mxu0
    %v348 = vpop.f32.mrb[0].mxu0
    %349 = vdwg.mxu0
    %350 = vst [vmem:[#allocation5] sm:$0xff] %v345
    // Predicated region
    $region34: #{tpu_custom_call.1} parent=1 // pred_check
      _
    $region35: #{tpu_custom_call.1} parent=1 // pred_check_branch
      %352 = sbr.rel (0) target = $region37
    $region36: #{tpu_custom_call.1} parent=1 // pred_region
      %s354 = ssub.s32 128, 128
      %355 = vsyncadd [#allocation4], %s354
      %s357 = sshll.u32 [#allocation5], 4
      %s358 = int_to_ptr.vmem [resolvable:$true] %s357
      %360 = dma.vmem_to_hbm [thread:$0]  %s358, 128, %s7, [#allocation4]
    $region37: #{tpu_custom_call.1} parent=1 // pred_fallthru
      _
    // Predicated region
    $region38: #{tpu_custom_call.1} parent=1 // pred_check
      _
    $region39: #{tpu_custom_call.1} parent=1 // pred_check_branch
      %362 = sbr.rel (0) target = $region41
    $region40: #{tpu_custom_call.1} parent=1 // pred_region
      %363 = dma.done [#allocation4], 128
    $region41: #{tpu_custom_call.1} parent=1 // pred_fallthru
      _
    %364 = vsyncpa [#allocation3], 1
    %365 = vsyncpa [#allocation4], 1

</llo_original>
